<compile_context>
chip_gen: v7x
topology: tpu7x:2x2x1
jax: 0.10.0
libtpu: 0.0.40
codegen_flags: <defaults>
</compile_context>

<pallas_src>
import jax
import jax.numpy as jnp
from jax import lax
from jax.experimental import pallas as pl
from jax.experimental.pallas import tpu as pltpu

_LANES = 128  # lane-dense output slab width


def _rankgen_kernel(pid_ref, pm_ref, sid_ref, sm_ref, tbl_ref, w_ref, o_ref):
    """Fused lookup -> masked-mean-pool -> RMSNorm -> projection -> dot.

    Per batch tile of BT rows:
      pid_ref/sid_ref : [BT, S]  int32  token ids (prefix / suffix)
      pm_ref/sm_ref   : [BT, S]  int32  attention masks
      tbl_ref         : [V, D]   bf16   embedding table (VMEM-resident)
      w_ref           : [D, E]   bf16   projection weight, gamma folded in
      o_ref           : [BT,128] f32    score broadcast across the lane axis
    """
    bt, seq = pid_ref.shape
    vocab = tbl_ref.shape[0]
    tbl = tbl_ref[...]
    w = w_ref[...]

    def bag_pool(ids_ref, m_ref):
        # Fold the mask into the ids: masked-out positions get the -1 sentinel,
        # which never matches a vocab id, so they drop out of the bag.
        ids = jnp.where(m_ref[...] > 0, ids_ref[...], -1)            # [BT,S] i32
        vidx = lax.broadcasted_iota(jnp.int32, (bt, seq, vocab), 2)  # [BT,S,V]
        onehot = (ids[:, :, None] == vidx).astype(jnp.float32)       # [BT,S,V]
        return jnp.sum(onehot, axis=1)                               # [BT,V]

    # Prefix and suffix rows processed jointly: one RMSNorm and two shared
    # MXU matmuls of shape [2*BT, .] (better MXU fill than two half-sized ones).
    bag = jnp.concatenate(
        [bag_pool(pid_ref, pm_ref), bag_pool(sid_ref, sm_ref)], axis=0)  # [2BT,V]
    # Each valid token contributes exactly 1 to the bag, so the valid-token
    # count (masked-mean denominator) is the row sum; clamp to avoid 0/0.
    denom = jnp.maximum(jnp.sum(bag, axis=1, keepdims=True), 1.0)        # [2BT,1]

    # Bag counts are small integers: exact in bf16; bf16 x bf16 -> f32 MXU acc
    # reproduces the gather+masked-sum exactly up to f32 summation order.
    pooled = jnp.dot(bag.astype(jnp.bfloat16), tbl,
                     preferred_element_type=jnp.float32) / denom         # [2BT,D]
    var = jnp.mean(pooled * pooled, axis=-1, keepdims=True)              # [2BT,1]
    normed = (pooled * lax.rsqrt(var + 1e-6)).astype(jnp.bfloat16)       # [2BT,D]
    emb = jnp.dot(normed, w, preferred_element_type=jnp.float32)         # [2BT,E]

    score = jnp.sum(emb[:bt] * emb[bt:], axis=-1, keepdims=True)         # [BT,1]
    # Lane-dense (full 128-lane, unmasked) store; wrapper slices lane 0.
    o_ref[...] = jnp.broadcast_to(score, (bt, o_ref.shape[1]))


def _vmem_capacity_bytes():
    try:
        return int(pltpu.get_tpu_info().vmem_capacity_bytes)
    except Exception:
        return 64 * 1024 * 1024  # assume the smallest generation (v7x) if query fails


def _pick_block_b(batch, seq, vocab, d_model, e_dim, pipeline_budget):
    """Largest batch tile (multiple of 8, divisor of batch) fitting the budget.

    The budget covers what actually scales with BT: the double-buffered id/mask
    streams, the double-buffered lane-dense output, the in-kernel one-hot
    temporaries (bool + f32) and the f32 bag/pooled/emb rows.  The tile is also
    capped at batch//2 so the "parallel" grid axis has >=2 tiles (keeps both
    v7x TensorCores busy; harmless on single-TC v5e/v6e).
    """
    per_row = (
        2 * 2 * 2 * seq * 4                   # ids + masks: 2 streams, 2 buffers, int32
        + 2 * _LANES * 4                      # lane-dense f32 output, 2 buffers
        + 2 * seq * vocab * (1 + 4)           # one-hot temps (bool + f32), both streams
        + 2 * (vocab + d_model + e_dim) * 4   # bag / pooled / emb f32 rows (joint 2*BT)
    )
    cap = max(8, min(batch, (pipeline_budget // max(per_row, 1)) // 8 * 8))
    if batch >= 16:
        cap = min(cap, max(8, (batch // 2) // 8 * 8))
    for cand in range(cap, 7, -8):
        if batch % cand == 0:
            return cand
    return batch  # small / awkward batch: fall back to a single tile


def rankgen_forward(prefixes, suffixes, params, *, block_b=None):
    """Mirrors RankGenModel.forward(prefixes, suffixes) -> [B] f32 scores."""
    embed_tbl = params["embed"].astype(jnp.bfloat16)          # [V, D] bf16, VMEM-resident
    gamma = params["gamma"].astype(jnp.float32)               # [1, D]
    # Fold the RMSNorm scale into the projection weight (one fewer VPU multiply
    # and one fewer resident operand); numerically within bf16 rounding.
    proj = (gamma.reshape(-1, 1) * params["proj"].astype(jnp.float32)
            ).astype(jnp.bfloat16)                            # [D, E] bf16

    # Kernel inputs are just ids + masks (int32): no [B,S,D] HBM streams at all.
    pid = prefixes["input_ids"].astype(jnp.int32)
    pm = prefixes["attention_mask"].astype(jnp.int32)
    sid = suffixes["input_ids"].astype(jnp.int32)
    sm = suffixes["attention_mask"].astype(jnp.int32)

    B, S = pid.shape
    V, D = embed_tbl.shape
    E = proj.shape[1]

    # VMEM sizing: leave headroom below physical capacity (v7x has only 64 MiB),
    # use the extra room on 128 MiB parts (v5e/v6e) for bigger tiles.
    cap_bytes = _vmem_capacity_bytes()
    vmem_limit = int(max(min(cap_bytes - 16 * 1024 * 1024, cap_bytes * 3 // 4),
                         32 * 1024 * 1024))
    resident = 2 * (V * D * 2 + D * E * 2)   # double-buffered bf16 table + projection
    pipeline_budget = max(vmem_limit - resident - 8 * 1024 * 1024, 2 * 1024 * 1024)

    bt = block_b if block_b is not None else _pick_block_b(B, S, V, D, E, pipeline_budget)
    assert B % bt == 0, f"batch {B} must be divisible by block_b {bt}"
    grid = (B // bt,)

    cost = pl.CostEstimate(
        flops=int(6 * B * S * V + 4 * B * V * D + 4 * B * D * E + 8 * B * D + 2 * B * E),
        transcendentals=int(2 * B),
        bytes_accessed=int(4 * B * S * 4 + V * D * 2 + D * E * 2 + B * _LANES * 4),
    )

    out = pl.pallas_call(
        _rankgen_kernel,
        out_shape=jax.ShapeDtypeStruct((B, _LANES), jnp.float32),
        grid=grid,
        in_specs=[
            pl.BlockSpec((bt, S), lambda i: (i, 0)),   # prefix ids
            pl.BlockSpec((bt, S), lambda i: (i, 0)),   # prefix mask
            pl.BlockSpec((bt, S), lambda i: (i, 0)),   # suffix ids
            pl.BlockSpec((bt, S), lambda i: (i, 0)),   # suffix mask
            pl.BlockSpec((V, D), lambda i: (0, 0)),    # embedding table (resident)
            pl.BlockSpec((D, E), lambda i: (0, 0)),    # projection weight (resident)
        ],
        out_specs=pl.BlockSpec((bt, _LANES), lambda i: (i, 0)),
        compiler_params=pltpu.CompilerParams(
            dimension_semantics=("parallel",),   # batch tiles independent (v7x megacore)
            vmem_limit_bytes=vmem_limit,
        ),
        cost_estimate=cost,
    )(pid, pm, sid, sm, embed_tbl, proj)

    return out[:, 0]  # [B]


def _reference_forward(prefixes, suffixes, params):
    """Pure-JAX reference of the same semantics (for the correctness check)."""
    embed_tbl = params["embed"].astype(jnp.bfloat16)
    gamma = params["gamma"].astype(jnp.float32)
    proj = params["proj"].astype(jnp.bfloat16)

    def pool(d):
        x = jnp.take(embed_tbl, d["input_ids"], axis=0).astype(jnp.float32)
        m = d["attention_mask"].astype(jnp.float32)
        denom = jnp.maximum(jnp.sum(m, axis=1, keepdims=True), 1.0)
        return jnp.sum(x * m[:, :, None], axis=1) / denom

    pooled = jnp.concatenate([pool(prefixes), pool(suffixes)], axis=0)
    var = jnp.mean(pooled * pooled, axis=-1, keepdims=True)
    normed = pooled * lax.rsqrt(var + 1e-6) * gamma
    emb = jnp.dot(normed.astype(jnp.bfloat16), proj,
                  preferred_element_type=jnp.float32)
    b = prefixes["input_ids"].shape[0]
    return jnp.sum(emb[:b] * emb[b:], axis=-1)


if __name__ == "__main__":
    B, S, V, D, E = 16, 16, 128, 64, 64  # batch, seq, vocab, d_model, embed dim

    key = jax.random.PRNGKey(0)
    k_emb, k_proj, k_pid, k_sid, k_plen, k_slen = jax.random.split(key, 6)

    params = {
        "embed": (0.02 * jax.random.normal(k_emb, (V, D))).astype(jnp.float32),
        "gamma": jnp.ones((1, D), dtype=jnp.float32),
        "proj": (jax.random.normal(k_proj, (D, E)) / jnp.sqrt(D)).astype(jnp.float32),
    }

    pos = jnp.arange(S)[None, :]
    plen = jax.random.randint(k_plen, (B, 1), 1, S + 1)
    slen = jax.random.randint(k_slen, (B, 1), 1, S + 1)

    prefixes = {
        "input_ids": jax.random.randint(k_pid, (B, S), 0, V, dtype=jnp.int32),
        "attention_mask": (pos < plen).astype(jnp.int32),
    }
    suffixes = {
        "input_ids": jax.random.randint(k_sid, (B, S), 0, V, dtype=jnp.int32),
        "attention_mask": (pos < slen).astype(jnp.int32),
    }

    dot_products = rankgen_forward(prefixes, suffixes, params)
    jax.block_until_ready(dot_products)

    ref = _reference_forward(prefixes, suffixes, params)
    assert dot_products.shape == (B,)
    max_err = float(jnp.max(jnp.abs(dot_products - ref)))
    assert jnp.allclose(dot_products, ref, atol=2e-3, rtol=2e-3), max_err

    print("KERNEL_OK")
</pallas_src>

<mosaic_0001>
module attributes {stable_mosaic.version = 11 : i64} {
  func.func @_rankgen_kernel(%arg0: i32, %arg1: memref<8x16xi32, #tpu.memory_space<vmem>>, %arg2: memref<8x16xi32, #tpu.memory_space<vmem>>, %arg3: memref<8x16xi32, #tpu.memory_space<vmem>>, %arg4: memref<8x16xi32, #tpu.memory_space<vmem>>, %arg5: memref<128x64xbf16, #tpu.memory_space<vmem>>, %arg6: memref<64x64xbf16, #tpu.memory_space<vmem>>, %arg7: memref<8x128xf32, #tpu.memory_space<vmem>>) attributes {dimension_semantics = [#tpu.dimension_semantics<parallel>], iteration_bounds = array<i64: 2>, scalar_prefetch = 0 : i64, scratch_operands = 0 : i64, tpu.core_type = #tpu.core_type<tc>, window_params = [{transform_indices = @transform_0, window_bounds = array<i64: 8, 16>}, {transform_indices = @transform_1, window_bounds = array<i64: 8, 16>}, {transform_indices = @transform_2, window_bounds = array<i64: 8, 16>}, {transform_indices = @transform_3, window_bounds = array<i64: 8, 16>}, {pipeline_mode = #tpu.pipeline_mode<synchronous>, transform_indices = @transform_4, window_bounds = array<i64: 128, 64>}, {pipeline_mode = #tpu.pipeline_mode<synchronous>, transform_indices = @transform_5, window_bounds = array<i64: 64, 64>}, {transform_indices = @transform_6, window_bounds = array<i64: 8, 128>}]} {
    %c0 = arith.constant 0 : index
    %c0_0 = arith.constant 0 : index
    %0 = vector.load %arg5[%c0, %c0_0] : memref<128x64xbf16, #tpu.memory_space<vmem>>, vector<128x64xbf16>
    %c0_1 = arith.constant 0 : index
    %c0_2 = arith.constant 0 : index
    %1 = vector.load %arg6[%c0_1, %c0_2] : memref<64x64xbf16, #tpu.memory_space<vmem>>, vector<64x64xbf16>
    %c0_3 = arith.constant 0 : index
    %c0_4 = arith.constant 0 : index
    %2 = vector.load %arg2[%c0_3, %c0_4] : memref<8x16xi32, #tpu.memory_space<vmem>>, vector<8x16xi32>
    %c0_i32 = arith.constant 0 : i32
    %3 = vector.broadcast %c0_i32 : i32 to vector<8x16xi32>
    %4 = arith.cmpi sgt, %2, %3 : vector<8x16xi32>
    %c0_5 = arith.constant 0 : index
    %c0_6 = arith.constant 0 : index
    %5 = vector.load %arg1[%c0_5, %c0_6] : memref<8x16xi32, #tpu.memory_space<vmem>>, vector<8x16xi32>
    %c-1_i32 = arith.constant -1 : i32
    %6 = vector.broadcast %c-1_i32 : i32 to vector<8x16xi32>
    %7 = arith.select %4, %5, %6 : vector<8x16xi1>, vector<8x16xi32>
    %8 = tpu.iota {dimensions = array<i32: 2>} : vector<8x16x128xi32>
    %9 = vector.shape_cast %7 : vector<8x16xi32> to vector<8x16x1xi32>
    %10 = vector.broadcast %9 : vector<8x16x1xi32> to vector<8x16x128xi32>
    %11 = arith.cmpi eq, %10, %8 : vector<8x16x128xi32>
    %12 = arith.extui %11 : vector<8x16x128xi1> to vector<8x16x128xi32>
    %13 = arith.sitofp %12 : vector<8x16x128xi32> to vector<8x16x128xf32>
    %cst = arith.constant dense<0.000000e+00> : vector<8x128xf32>
    %14 = vector.multi_reduction <add>, %13, %cst [1] : vector<8x16x128xf32> to vector<8x128xf32>
    %c0_7 = arith.constant 0 : index
    %c0_8 = arith.constant 0 : index
    %15 = vector.load %arg4[%c0_7, %c0_8] : memref<8x16xi32, #tpu.memory_space<vmem>>, vector<8x16xi32>
    %c0_i32_9 = arith.constant 0 : i32
    %16 = vector.broadcast %c0_i32_9 : i32 to vector<8x16xi32>
    %17 = arith.cmpi sgt, %15, %16 : vector<8x16xi32>
    %c0_10 = arith.constant 0 : index
    %c0_11 = arith.constant 0 : index
    %18 = vector.load %arg3[%c0_10, %c0_11] : memref<8x16xi32, #tpu.memory_space<vmem>>, vector<8x16xi32>
    %c-1_i32_12 = arith.constant -1 : i32
    %19 = vector.broadcast %c-1_i32_12 : i32 to vector<8x16xi32>
    %20 = arith.select %17, %18, %19 : vector<8x16xi1>, vector<8x16xi32>
    %21 = tpu.iota {dimensions = array<i32: 2>} : vector<8x16x128xi32>
    %22 = vector.shape_cast %20 : vector<8x16xi32> to vector<8x16x1xi32>
    %23 = vector.broadcast %22 : vector<8x16x1xi32> to vector<8x16x128xi32>
    %24 = arith.cmpi eq, %23, %21 : vector<8x16x128xi32>
    %25 = arith.extui %24 : vector<8x16x128xi1> to vector<8x16x128xi32>
    %26 = arith.sitofp %25 : vector<8x16x128xi32> to vector<8x16x128xf32>
    %cst_13 = arith.constant dense<0.000000e+00> : vector<8x128xf32>
    %27 = vector.multi_reduction <add>, %26, %cst_13 [1] : vector<8x16x128xf32> to vector<8x128xf32>
    %28 = tpu.concatenate %14, %27 in 0 : vector<8x128xf32>, vector<8x128xf32> -> vector<16x128xf32>
    %cst_14 = arith.constant dense<0.000000e+00> : vector<16xf32>
    %29 = vector.multi_reduction <add>, %28, %cst_14 [1] : vector<16x128xf32> to vector<16xf32>
    %30 = vector.shape_cast %29 : vector<16xf32> to vector<16x1xf32>
    %cst_15 = arith.constant 1.000000e+00 : f32
    %31 = vector.broadcast %cst_15 : f32 to vector<16x1xf32>
    %32 = arith.maximumf %30, %31 : vector<16x1xf32>
    %33 = arith.truncf %28 : vector<16x128xf32> to vector<16x128xbf16>
    %cst_16 = arith.constant dense<0.000000e+00> : vector<16x64xf32>
    %34 = tpu.matmul %33, %0, %cst_16 {dimension_numbers = #tpu.dot_dimension_numbers<[1], [0], [0], [1], [0, 0, 1, 1], [], []>} : vector<16x128xbf16>, vector<128x64xbf16>, vector<16x64xf32> -> vector<16x64xf32>
    %35 = vector.broadcast %32 : vector<16x1xf32> to vector<16x64xf32>
    %36 = arith.divf %34, %35 : vector<16x64xf32>
    %37 = arith.mulf %36, %36 : vector<16x64xf32>
    %cst_17 = arith.constant dense<0.000000e+00> : vector<16xf32>
    %38 = vector.multi_reduction <add>, %37, %cst_17 [1] : vector<16x64xf32> to vector<16xf32>
    %39 = vector.shape_cast %38 : vector<16xf32> to vector<16x1xf32>
    %cst_18 = arith.constant 6.400000e+01 : f32
    %40 = vector.broadcast %cst_18 : f32 to vector<16x1xf32>
    %41 = arith.divf %39, %40 : vector<16x1xf32>
    %cst_19 = arith.constant 9.99999997E-7 : f32
    %42 = vector.broadcast %cst_19 : f32 to vector<16x1xf32>
    %43 = arith.addf %41, %42 : vector<16x1xf32>
    %44 = math.rsqrt %43 : vector<16x1xf32>
    %45 = vector.broadcast %44 : vector<16x1xf32> to vector<16x64xf32>
    %46 = arith.mulf %36, %45 : vector<16x64xf32>
    %47 = arith.truncf %46 : vector<16x64xf32> to vector<16x64xbf16>
    %cst_20 = arith.constant dense<0.000000e+00> : vector<16x64xf32>
    %48 = tpu.matmul %47, %1, %cst_20 {dimension_numbers = #tpu.dot_dimension_numbers<[1], [0], [0], [1], [0, 0, 1, 1], [], []>} : vector<16x64xbf16>, vector<64x64xbf16>, vector<16x64xf32> -> vector<16x64xf32>
    %49 = vector.extract_strided_slice %48 {offsets = [0, 0], sizes = [8, 64], strides = [1, 1]} : vector<16x64xf32> to vector<8x64xf32>
    %50 = vector.extract_strided_slice %48 {offsets = [8, 0], sizes = [8, 64], strides = [1, 1]} : vector<16x64xf32> to vector<8x64xf32>
    %51 = arith.mulf %49, %50 : vector<8x64xf32>
    %cst_21 = arith.constant dense<0.000000e+00> : vector<8xf32>
    %52 = vector.multi_reduction <add>, %51, %cst_21 [1] : vector<8x64xf32> to vector<8xf32>
    %53 = vector.shape_cast %52 : vector<8xf32> to vector<8x1xf32>
    %54 = vector.shape_cast %53 : vector<8x1xf32> to vector<8x1xf32>
    %55 = vector.broadcast %54 : vector<8x1xf32> to vector<8x128xf32>
    %c0_22 = arith.constant 0 : index
    %c0_23 = arith.constant 0 : index
    %56 = vector.load %arg7[%c0_22, %c0_23] : memref<8x128xf32, #tpu.memory_space<vmem>>, vector<8x128xf32>
    tpu.vector_store %arg7[%c0_22, %c0_23], %55 {strides = array<i32>} : memref<8x128xf32, #tpu.memory_space<vmem>>, vector<8x128xf32>,
    return
  }
  func.func @transform_0(%arg0: i32) -> (i32, i32) {
    %c0_i32 = arith.constant 0 : i32
    %c0_i32_0 = arith.constant 0 : i32
    return %arg0, %c0_i32 : i32, i32
  }
  func.func @transform_1(%arg0: i32) -> (i32, i32) {
    %c0_i32 = arith.constant 0 : i32
    %c0_i32_0 = arith.constant 0 : i32
    return %arg0, %c0_i32 : i32, i32
  }
  func.func @transform_2(%arg0: i32) -> (i32, i32) {
    %c0_i32 = arith.constant 0 : i32
    %c0_i32_0 = arith.constant 0 : i32
    return %arg0, %c0_i32 : i32, i32
  }
  func.func @transform_3(%arg0: i32) -> (i32, i32) {
    %c0_i32 = arith.constant 0 : i32
    %c0_i32_0 = arith.constant 0 : i32
    return %arg0, %c0_i32 : i32, i32
  }
  func.func @transform_4(%arg0: i32) -> (i32, i32) {
    %c0_i32 = arith.constant 0 : i32
    %c0_i32_0 = arith.constant 0 : i32
    %c0_i32_1 = arith.constant 0 : i32
    return %c0_i32, %c0_i32_0 : i32, i32
  }
  func.func @transform_5(%arg0: i32) -> (i32, i32) {
    %c0_i32 = arith.constant 0 : i32
    %c0_i32_0 = arith.constant 0 : i32
    %c0_i32_1 = arith.constant 0 : i32
    return %c0_i32, %c0_i32_0 : i32, i32
  }
  func.func @transform_6(%arg0: i32) -> (i32, i32) {
    %c0_i32 = arith.constant 0 : i32
    %c0_i32_0 = arith.constant 0 : i32
    return %arg0, %c0_i32 : i32, i32
  }
}

</mosaic_0001>

<llo_original>
// kernel: tpu_custom_call.1
$region0: #{tpu_custom_call.1}
  #allocation0 [shape = 'u32[]', space=smem, size = 0x4, offset = 0x4, fixed_abs, tag = 'smem constant byte address 0x4 - core index']
  #allocation1 [shape = 'u32[144,128]{1,0:T(1,128)}', space=vmem, size = 0x12000, scoped, tag = 'internal scratch']
  %s0 = inlined_call_operand.vmem [shape: s32[16,16], index: 0, kind: input, shape index: {}]
  %s1 = inlined_call_operand.vmem [shape: s32[16,16], index: 1, kind: input, shape index: {}]
  %s2 = inlined_call_operand.vmem [shape: s32[16,16], index: 2, kind: input, shape index: {}]
  %s3 = inlined_call_operand.vmem [shape: s32[16,16], index: 3, kind: input, shape index: {}]
  %s4 = inlined_call_operand.vmem [shape: bf16[128,64], index: 4, kind: input, shape index: {}]
  %s5 = inlined_call_operand.vmem [shape: bf16[64,64], index: 5, kind: input, shape index: {}]
  %s6 = inlined_call_operand.hbm [shape: f32[16,128], index: 6, kind: output, shape index: {}]
  %s7 = sld [smem:[#allocation0]]
  $region57: #{tpu_custom_call.1} parent=0
    _
  %s9 = ssub.s32 1, %s7
  %s10 = scalar_select 0, %s9, %s7
  $region1: #{tpu_custom_call.1} parent=0
    #allocation2 [shape = 'u8[8192]{0}', space=vmem, size = 0x2000, scoped, tag = 'output window, operand 0']
    #allocation3 [shape = 's32[2]{0}', space=sflag, size = 0x8, scoped, tag = 'scoped memory for tpu_custom_call.1']
    %11 = vsyncpa [#allocation3], 0
    %s12 = scalar_lea.sflag [#allocation3], 1
    %13 = vsyncpa %s12, 0
    loop: start=0, step=1, limit=4
    $region2: #{tpu_custom_call.1} parent=1 // loop_pre_header
      _
    $region3: #{tpu_custom_call.1} parent=1 // loop_header
      %s15 = sphi 0, %s19
      %p16 = scmp.ge.s32.totalorder %s15, 4
      %s25 = sphi 0, %s27
      %s28 = sphi 0, %s25
      %s29 = sphi 0, %s28
      %s45 = sphi 0, %s29
      %s51 = sphi 0, %s53
      %s54 = sphi 0, %s51
      %s55 = sphi 0, %s54
      %s71 = sphi 0, %s55
      %s77 = sphi 0, %s79
      %s80 = sphi 0, %s77
      %s81 = sphi 0, %s80
      %s97 = sphi 0, %s81
      %s103 = sphi 0, %s105
      %s106 = sphi 0, %s103
      %s107 = sphi 0, %s106
      %s123 = sphi 0, %s107
      %s127 = sphi 0, %s127
      %s129 = sphi 0, %s127
      %s130 = sphi 0, %s129
      %s144 = sphi 0, %s130
      %s148 = sphi 0, %s148
      %s150 = sphi 0, %s148
      %s151 = sphi 0, %s150
      %s165 = sphi 0, %s151
      %s171 = sphi 0, %s173
      %s174 = sphi 0, %s171
      %s175 = sphi 0, %s174
      %s191 = sphi 0, %s175
    $region4: #{tpu_custom_call.1} parent=1 // loop_header_branch
      %18 = sbr.rel (%p16) target = $region8
    $region5: #{tpu_custom_call.1} parent=1 // loop_body
      %s20 = ssub.s32 %s15, 1
      %s21 = ssub.s32 %s15, 2
      %s22 = sadd.s32 %s15, 1
      %s23 = ssub.s32 %s15, %s22
      %p24 = scmp.eq.s32.totalorder %s23, 0
      %s26 = sadd.s32 %s25, 1
      %s27 = scalar_select %p24, %s25, %s26
      %p30 = pneg %p24
      %p31 = scmp.eq.s32.totalorder %s15, 1
      %p32 = por %p30, %p31
      %p33 = scmp.ne.s32.totalorder %s25, %s28
      %p34 = scmp.eq.s32.totalorder %s15, 0
      %p35 = por %p33, %p34
      %p36 = scmp.ne.s32.totalorder %s25, %s28
      %p37 = scmp.eq.s32.totalorder %s20, 1
      %p38 = por %p36, %p37
      %p39 = scmp.ne.s32.totalorder %s28, %s29
      %p40 = scmp.eq.s32.totalorder %s20, 0
      %p41 = por %p39, %p40
      %p42 = scmp.ne.s32.totalorder %s28, %s29
      %p43 = scmp.eq.s32.totalorder %s21, 1
      %p44 = por %p42, %p43
      %p46 = scmp.ne.s32.totalorder %s29, %s45
      %p47 = scmp.eq.s32.totalorder %s21, 0
      %p48 = por %p46, %p47
      %s49 = ssub.s32 %s15, %s22
      %p50 = scmp.eq.s32.totalorder %s49, 0
      %s52 = sadd.s32 %s51, 1
      %s53 = scalar_select %p50, %s51, %s52
      %p56 = pneg %p50
      %p57 = scmp.eq.s32.totalorder %s15, 1
      %p58 = por %p56, %p57
      %p59 = scmp.ne.s32.totalorder %s51, %s54
      %p60 = scmp.eq.s32.totalorder %s15, 0
      %p61 = por %p59, %p60
      %p62 = scmp.ne.s32.totalorder %s51, %s54
      %p63 = scmp.eq.s32.totalorder %s20, 1
      %p64 = por %p62, %p63
      %p65 = scmp.ne.s32.totalorder %s54, %s55
      %p66 = scmp.eq.s32.totalorder %s20, 0
      %p67 = por %p65, %p66
      %p68 = scmp.ne.s32.totalorder %s54, %s55
      %p69 = scmp.eq.s32.totalorder %s21, 1
      %p70 = por %p68, %p69
      %p72 = scmp.ne.s32.totalorder %s55, %s71
      %p73 = scmp.eq.s32.totalorder %s21, 0
      %p74 = por %p72, %p73
      %s75 = ssub.s32 %s15, %s22
      %p76 = scmp.eq.s32.totalorder %s75, 0
      %s78 = sadd.s32 %s77, 1
      %s79 = scalar_select %p76, %s77, %s78
      %p82 = pneg %p76
      %p83 = scmp.eq.s32.totalorder %s15, 1
      %p84 = por %p82, %p83
      %p85 = scmp.ne.s32.totalorder %s77, %s80
      %p86 = scmp.eq.s32.totalorder %s15, 0
      %p87 = por %p85, %p86
      %p88 = scmp.ne.s32.totalorder %s77, %s80
      %p89 = scmp.eq.s32.totalorder %s20, 1
      %p90 = por %p88, %p89
      %p91 = scmp.ne.s32.totalorder %s80, %s81
      %p92 = scmp.eq.s32.totalorder %s20, 0
      %p93 = por %p91, %p92
      %p94 = scmp.ne.s32.totalorder %s80, %s81
      %p95 = scmp.eq.s32.totalorder %s21, 1
      %p96 = por %p94, %p95
      %p98 = scmp.ne.s32.totalorder %s81, %s97
      %p99 = scmp.eq.s32.totalorder %s21, 0
      %p100 = por %p98, %p99
      %s101 = ssub.s32 %s15, %s22
      %p102 = scmp.eq.s32.totalorder %s101, 0
      %s104 = sadd.s32 %s103, 1
      %s105 = scalar_select %p102, %s103, %s104
      %p108 = pneg %p102
      %p109 = scmp.eq.s32.totalorder %s15, 1
      %p110 = por %p108, %p109
      %p111 = scmp.ne.s32.totalorder %s103, %s106
      %p112 = scmp.eq.s32.totalorder %s15, 0
      %p113 = por %p111, %p112
      %p114 = scmp.ne.s32.totalorder %s103, %s106
      %p115 = scmp.eq.s32.totalorder %s20, 1
      %p116 = por %p114, %p115
      %p117 = scmp.ne.s32.totalorder %s106, %s107
      %p118 = scmp.eq.s32.totalorder %s20, 0
      %p119 = por %p117, %p118
      %p120 = scmp.ne.s32.totalorder %s106, %s107
      %p121 = scmp.eq.s32.totalorder %s21, 1
      %p122 = por %p120, %p121
      %p124 = scmp.ne.s32.totalorder %s107, %s123
      %p125 = scmp.eq.s32.totalorder %s21, 0
      %p126 = por %p124, %p125
      %s128 = sadd.s32 %s127, 1
      %p131 = scmp.eq.s32.totalorder %s15, 1
      %p132 = scmp.ne.s32.totalorder %s127, %s129
      %p133 = scmp.eq.s32.totalorder %s15, 0
      %p134 = por %p132, %p133
      %p135 = scmp.ne.s32.totalorder %s127, %s129
      %p136 = scmp.eq.s32.totalorder %s20, 1
      %p137 = por %p135, %p136
      %p138 = scmp.ne.s32.totalorder %s129, %s130
      %p139 = scmp.eq.s32.totalorder %s20, 0
      %p140 = por %p138, %p139
      %p141 = scmp.ne.s32.totalorder %s129, %s130
      %p142 = scmp.eq.s32.totalorder %s21, 1
      %p143 = por %p141, %p142
      %p145 = scmp.ne.s32.totalorder %s130, %s144
      %p146 = scmp.eq.s32.totalorder %s21, 0
      %p147 = por %p145, %p146
      %s149 = sadd.s32 %s148, 1
      %p152 = scmp.eq.s32.totalorder %s15, 1
      %p153 = scmp.ne.s32.totalorder %s148, %s150
      %p154 = scmp.eq.s32.totalorder %s15, 0
      %p155 = por %p153, %p154
      %p156 = scmp.ne.s32.totalorder %s148, %s150
      %p157 = scmp.eq.s32.totalorder %s20, 1
      %p158 = por %p156, %p157
      %p159 = scmp.ne.s32.totalorder %s150, %s151
      %p160 = scmp.eq.s32.totalorder %s20, 0
      %p161 = por %p159, %p160
      %p162 = scmp.ne.s32.totalorder %s150, %s151
      %p163 = scmp.eq.s32.totalorder %s21, 1
      %p164 = por %p162, %p163
      %p166 = scmp.ne.s32.totalorder %s151, %s165
      %p167 = scmp.eq.s32.totalorder %s21, 0
      %p168 = por %p166, %p167
      %s169 = ssub.s32 %s15, %s22
      %p170 = scmp.eq.s32.totalorder %s169, 0
      %s172 = sadd.s32 %s171, 1
      %s173 = scalar_select %p170, %s171, %s172
      %p176 = pneg %p170
      %p177 = scmp.eq.s32.totalorder %s15, 1
      %p178 = por %p176, %p177
      %p179 = scmp.ne.s32.totalorder %s171, %s174
      %p180 = scmp.eq.s32.totalorder %s15, 0
      %p181 = por %p179, %p180
      %p182 = scmp.ne.s32.totalorder %s171, %s174
      %p183 = scmp.eq.s32.totalorder %s20, 1
      %p184 = por %p182, %p183
      %p185 = scmp.ne.s32.totalorder %s174, %s175
      %p186 = scmp.eq.s32.totalorder %s20, 0
      %p187 = por %p185, %p186
      %p188 = scmp.ne.s32.totalorder %s174, %s175
      %p189 = scmp.eq.s32.totalorder %s21, 1
      %p190 = por %p188, %p189
      %p192 = scmp.ne.s32.totalorder %s175, %s191
      %p193 = scmp.eq.s32.totalorder %s21, 0
      %p194 = por %p192, %p193
      %p195 = scmp.le.s32.totalorder 1, %s15
      %p196 = scmp.lt.s32.totalorder %s15, 3
      %p197 = pnand %p195, %p196
      %p198 = pneg %p197
      // Predicated region
      $region9: #{tpu_custom_call.1} parent=5 // pred_check
        _
      $region10: #{tpu_custom_call.1} parent=5 // pred_check_branch
        %200 = sbr.rel (%p197) target = $region12
      $region11: #{tpu_custom_call.1} parent=5 // pred_region
        %s201 = ssub.s32 %s15, 1
        // Predicated region
        $region13: #{tpu_custom_call.1} parent=11 // pred_check
          %p202 = pneg %p140
        $region14: #{tpu_custom_call.1} parent=11 // pred_check_branch
          %204 = sbr.rel (%p202) target = $region16
        $region15: #{tpu_custom_call.1} parent=11 // pred_region
          _
        $region16: #{tpu_custom_call.1} parent=11 // pred_fallthru
          _
        // Predicated region
        $region17: #{tpu_custom_call.1} parent=11 // pred_check
          %p205 = pneg %p161
        $region18: #{tpu_custom_call.1} parent=11 // pred_check_branch
          %207 = sbr.rel (%p205) target = $region20
        $region19: #{tpu_custom_call.1} parent=11 // pred_region
          _
        $region20: #{tpu_custom_call.1} parent=11 // pred_fallthru
          _
      $region12: #{tpu_custom_call.1} parent=5 // pred_fallthru
        _
      %p208 = scmp.lt.s32.totalorder %s15, 2
      // Predicated region
      $region21: #{tpu_custom_call.1} parent=5 // pred_check
        %p209 = pneg %p208
      $region22: #{tpu_custom_call.1} parent=5 // pred_check_branch
        %211 = sbr.rel (%p209) target = $region24
      $region23: #{tpu_custom_call.1} parent=5 // pred_region
        // Predicated region
        $region25: #{tpu_custom_call.1} parent=23 // pred_check
          %p212 = pneg %p35
        $region26: #{tpu_custom_call.1} parent=23 // pred_check_branch
          %214 = sbr.rel (%p212) target = $region28
        $region27: #{tpu_custom_call.1} parent=23 // pred_region
          %p215 = scmp.lt.s32.totalorder %s15, 1
          %s216 = scalar_select %p215, %s15, 1
          %s217 = smul.addr %s216, 8
          %s218 = scalar_lea.vmem %s0, %s217
        $region28: #{tpu_custom_call.1} parent=23 // pred_fallthru
          _
        // Predicated region
        $region29: #{tpu_custom_call.1} parent=23 // pred_check
          %p219 = pneg %p61
        $region30: #{tpu_custom_call.1} parent=23 // pred_check_branch
          %221 = sbr.rel (%p219) target = $region32
        $region31: #{tpu_custom_call.1} parent=23 // pred_region
          %p222 = scmp.lt.s32.totalorder %s15, 1
          %s223 = scalar_select %p222, %s15, 1
          %s224 = smul.addr %s223, 8
          %s225 = scalar_lea.vmem %s1, %s224
        $region32: #{tpu_custom_call.1} parent=23 // pred_fallthru
          _
        // Predicated region
        $region33: #{tpu_custom_call.1} parent=23 // pred_check
          %p226 = pneg %p87
        $region34: #{tpu_custom_call.1} parent=23 // pred_check_branch
          %228 = sbr.rel (%p226) target = $region36
        $region35: #{tpu_custom_call.1} parent=23 // pred_region
          %p229 = scmp.lt.s32.totalorder %s15, 1
          %s230 = scalar_select %p229, %s15, 1
          %s231 = smul.addr %s230, 8
          %s232 = scalar_lea.vmem %s2, %s231
        $region36: #{tpu_custom_call.1} parent=23 // pred_fallthru
          _
        // Predicated region
        $region37: #{tpu_custom_call.1} parent=23 // pred_check
          %p233 = pneg %p113
        $region38: #{tpu_custom_call.1} parent=23 // pred_check_branch
          %235 = sbr.rel (%p233) target = $region40
        $region39: #{tpu_custom_call.1} parent=23 // pred_region
          %p236 = scmp.lt.s32.totalorder %s15, 1
          %s237 = scalar_select %p236, %s15, 1
          %s238 = smul.addr %s237, 8
          %s239 = scalar_lea.vmem %s3, %s238
        $region40: #{tpu_custom_call.1} parent=23 // pred_fallthru
          _
      $region24: #{tpu_custom_call.1} parent=5 // pred_fallthru
        _
      %p240 = scmp.le.s32.totalorder 1, %s15
      %p241 = scmp.lt.s32.totalorder %s15, 3
      %p242 = pnand %p240, %p241
      %p243 = pneg %p242
      // Predicated region
      $region41: #{tpu_custom_call.1} parent=5 // pred_check
        _
      $region42: #{tpu_custom_call.1} parent=5 // pred_check_branch
        %245 = sbr.rel (%p242) target = $region44
      $region43: #{tpu_custom_call.1} parent=5 // pred_region
        %s246 = ssub.s32 %s15, 1
        %p247 = scmp.lt.s32.totalorder %s20, 1
        %s248 = scalar_select %p247, %s20, 1
        %s249 = smul.addr %s248, 8
        %s250 = scalar_lea.vmem %s0, %s249
        %p251 = pneg %p41
        %p252 = pneg %p38
        %p253 = scmp.lt.s32.totalorder %s20, 1
        %s254 = scalar_select %p253, %s20, 1
        %s255 = smul.addr %s254, 8
        %s256 = scalar_lea.vmem %s1, %s255
        %p257 = pneg %p67
        %p258 = pneg %p64
        %p259 = scmp.lt.s32.totalorder %s20, 1
        %s260 = scalar_select %p259, %s20, 1
        %s261 = smul.addr %s260, 8
        %s262 = scalar_lea.vmem %s2, %s261
        %p263 = pneg %p93
        %p264 = pneg %p90
        %p265 = scmp.lt.s32.totalorder %s20, 1
        %s266 = scalar_select %p265, %s20, 1
        %s267 = smul.addr %s266, 8
        %s268 = scalar_lea.vmem %s3, %s267
        %p269 = pneg %p119
        %p270 = pneg %p116
        %p271 = pneg %p140
        %p272 = pneg %p137
        %p273 = pneg %p161
        %p274 = pneg %p158
        %p275 = pneg %p187
        %p276 = pneg %p184
        %s277 = sand.u32 %s174, 1
        %s278 = scalar_lea.sflag [#allocation3], %s277
        %s279 = sand.u32 %s174, 1
        %s280 = smul.addr %s279, 8
        %s281 = scalar_lea.vmem [#allocation2], %s280
        %p282 = scmp.lt.s32.totalorder %s20, 1
        %s283 = scalar_select %p282, %s20, 1
        %s284 = smul.addr %s283, 8
        %s285 = scalar_lea.vmem %s0, %s284
        %p286 = scmp.lt.s32.totalorder %s20, 1
        %s287 = scalar_select %p286, %s20, 1
        %s288 = smul.addr %s287, 8
        %s289 = scalar_lea.vmem %s1, %s288
        %p290 = scmp.lt.s32.totalorder %s20, 1
        %s291 = scalar_select %p290, %s20, 1
        %s292 = smul.addr %s291, 8
        %s293 = scalar_lea.vmem %s2, %s292
        %p294 = scmp.lt.s32.totalorder %s20, 1
        %s295 = scalar_select %p294, %s20, 1
        %s296 = smul.addr %s295, 8
        %s297 = scalar_lea.vmem %s3, %s296
        %v299 = vld [vmem:[%s4] sm:$0xf]
        %v300 = vld [vmem:[%s4 + $0x4] sm:$0xf]
        %v301 = vld [vmem:[%s4 + $0x8] sm:$0xf]
        %v302 = vld [vmem:[%s4 + $0xc] sm:$0xf]
        %v303 = vld [vmem:[%s4 + $0x10] sm:$0xf]
        %v304 = vld [vmem:[%s4 + $0x14] sm:$0xf]
        %v305 = vld [vmem:[%s4 + $0x18] sm:$0xf]
        %v306 = vld [vmem:[%s4 + $0x1c] sm:$0xf]
        %v307 = vld [vmem:[%s4 + $0x20] sm:$0xf]
        %v308 = vld [vmem:[%s4 + $0x24] sm:$0xf]
        %v309 = vld [vmem:[%s4 + $0x28] sm:$0xf]
        %v310 = vld [vmem:[%s4 + $0x2c] sm:$0xf]
        %v311 = vld [vmem:[%s4 + $0x30] sm:$0xf]
        %v312 = vld [vmem:[%s4 + $0x34] sm:$0xf]
        %v313 = vld [vmem:[%s4 + $0x38] sm:$0xf]
        %v314 = vld [vmem:[%s4 + $0x3c] sm:$0xf]
        %v315 = vld [vmem:[%s5] sm:$0xf]
        %v316 = vld [vmem:[%s5 + $0x4] sm:$0xf]
        %v317 = vld [vmem:[%s5 + $0x8] sm:$0xf]
        %v318 = vld [vmem:[%s5 + $0xc] sm:$0xf]
        %v319 = vld [vmem:[%s5 + $0x10] sm:$0xf]
        %v320 = vld [vmem:[%s5 + $0x14] sm:$0xf]
        %v321 = vld [vmem:[%s5 + $0x18] sm:$0xf]
        %v322 = vld [vmem:[%s5 + $0x1c] sm:$0xf]
        %v323 = vld [vmem:[%s289] sm:$0xff]
        %vm324 = vcmp.gt.s32.totalorder %v323, 0
        %v325 = vld [vmem:[%s285] sm:$0xff]
        %v326 = vsel %vm324, %v325, 4294967295
        %v327 = vlaneseq
        %v328 = vand.u32 %v327, 127
        %v329 = vlaneseq
        %v330 = vshrl.u32 %v329, 7
        %v331 = vsub.s32 0, %v330
        %v332 = vrot.slane %v326, %v331
        %334 = vbcast.lane.b32.xlu0 %v332, 256
        %v335 = vpop.permute.xlu0 %334
        %s337 = sor.u32 256, 8
        %338 = vbcast.lane.b32.xlu0 %v332, %s337
        %v339 = vpop.permute.xlu0 %338
        %v340 = vlaneseq
        %v341 = vshrl.u32 %v340, 7
        %v342 = vsub.s32 1, %v341
        %v343 = vrot.slane %v326, %v342
        %345 = vbcast.lane.b32.xlu0 %v343, 256
        %v346 = vpop.permute.xlu0 %345
        %s348 = sor.u32 256, 8
        %349 = vbcast.lane.b32.xlu0 %v343, %s348
        %v350 = vpop.permute.xlu0 %349
        %v351 = vlaneseq
        %v352 = vshrl.u32 %v351, 7
        %v353 = vsub.s32 2, %v352
        %v354 = vrot.slane %v326, %v353
        %356 = vbcast.lane.b32.xlu0 %v354, 256
        %v357 = vpop.permute.xlu0 %356
        %s359 = sor.u32 256, 8
        %360 = vbcast.lane.b32.xlu0 %v354, %s359
        %v361 = vpop.permute.xlu0 %360
        %v362 = vlaneseq
        %v363 = vshrl.u32 %v362, 7
        %v364 = vsub.s32 3, %v363
        %v365 = vrot.slane %v326, %v364
        %367 = vbcast.lane.b32.xlu0 %v365, 256
        %v368 = vpop.permute.xlu0 %367
        %s370 = sor.u32 256, 8
        %371 = vbcast.lane.b32.xlu0 %v365, %s370
        %v372 = vpop.permute.xlu0 %371
        %v373 = vlaneseq
        %v374 = vshrl.u32 %v373, 7
        %v375 = vsub.s32 4, %v374
        %v376 = vrot.slane %v326, %v375
        %378 = vbcast.lane.b32.xlu0 %v376, 256
        %v379 = vpop.permute.xlu0 %378
        %s381 = sor.u32 256, 8
        %382 = vbcast.lane.b32.xlu0 %v376, %s381
        %v383 = vpop.permute.xlu0 %382
        %v384 = vlaneseq
        %v385 = vshrl.u32 %v384, 7
        %v386 = vsub.s32 5, %v385
        %v387 = vrot.slane %v326, %v386
        %389 = vbcast.lane.b32.xlu0 %v387, 256
        %v390 = vpop.permute.xlu0 %389
        %s392 = sor.u32 256, 8
        %393 = vbcast.lane.b32.xlu0 %v387, %s392
        %v394 = vpop.permute.xlu0 %393
        %v395 = vlaneseq
        %v396 = vshrl.u32 %v395, 7
        %v397 = vsub.s32 6, %v396
        %v398 = vrot.slane %v326, %v397
        %400 = vbcast.lane.b32.xlu0 %v398, 256
        %v401 = vpop.permute.xlu0 %400
        %s403 = sor.u32 256, 8
        %404 = vbcast.lane.b32.xlu0 %v398, %s403
        %v405 = vpop.permute.xlu0 %404
        %v406 = vlaneseq
        %v407 = vshrl.u32 %v406, 7
        %v408 = vsub.s32 7, %v407
        %v409 = vrot.slane %v326, %v408
        %411 = vbcast.lane.b32.xlu0 %v409, 256
        %v412 = vpop.permute.xlu0 %411
        %s414 = sor.u32 256, 8
        %415 = vbcast.lane.b32.xlu0 %v409, %s414
        %v416 = vpop.permute.xlu0 %415
        %vm417 = vcmp.eq.s32.totalorder %v335, %v328
        %vm418 = vcmp.eq.s32.totalorder %v339, %v328
        %vm419 = vcmp.eq.s32.totalorder %v346, %v328
        %vm420 = vcmp.eq.s32.totalorder %v350, %v328
        %vm421 = vcmp.eq.s32.totalorder %v357, %v328
        %vm422 = vcmp.eq.s32.totalorder %v361, %v328
        %vm423 = vcmp.eq.s32.totalorder %v368, %v328
        %vm424 = vcmp.eq.s32.totalorder %v372, %v328
        %vm425 = vcmp.eq.s32.totalorder %v379, %v328
        %vm426 = vcmp.eq.s32.totalorder %v383, %v328
        %vm427 = vcmp.eq.s32.totalorder %v390, %v328
        %vm428 = vcmp.eq.s32.totalorder %v394, %v328
        %vm429 = vcmp.eq.s32.totalorder %v401, %v328
        %vm430 = vcmp.eq.s32.totalorder %v405, %v328
        %vm431 = vcmp.eq.s32.totalorder %v412, %v328
        %vm432 = vcmp.eq.s32.totalorder %v416, %v328
        %v433 = vsel %vm417, 1, 0
        %v434 = vsel %vm418, 1, 0
        %v435 = vsel %vm419, 1, 0
        %v436 = vsel %vm420, 1, 0
        %v437 = vsel %vm421, 1, 0
        %v438 = vsel %vm422, 1, 0
        %v439 = vsel %vm423, 1, 0
        %v440 = vsel %vm424, 1, 0
        %v441 = vsel %vm425, 1, 0
        %v442 = vsel %vm426, 1, 0
        %v443 = vsel %vm427, 1, 0
        %v444 = vsel %vm428, 1, 0
        %v445 = vsel %vm429, 1, 0
        %v446 = vsel %vm430, 1, 0
        %v447 = vsel %vm431, 1, 0
        %v448 = vsel %vm432, 1, 0
        %v449 = vcvt.s32.f32 %v433
        %v450 = vcvt.s32.f32 %v434
        %v451 = vcvt.s32.f32 %v435
        %v452 = vcvt.s32.f32 %v436
        %v453 = vcvt.s32.f32 %v437
        %v454 = vcvt.s32.f32 %v438
        %v455 = vcvt.s32.f32 %v439
        %v456 = vcvt.s32.f32 %v440
        %v457 = vcvt.s32.f32 %v441
        %v458 = vcvt.s32.f32 %v442
        %v459 = vcvt.s32.f32 %v443
        %v460 = vcvt.s32.f32 %v444
        %v461 = vcvt.s32.f32 %v445
        %v462 = vcvt.s32.f32 %v446
        %v463 = vcvt.s32.f32 %v447
        %v464 = vcvt.s32.f32 %v448
        %v465 = vadd.f32 %v449, %v450
        %v466 = vrot.slane %v465, 4
        %v467 = vadd.f32 %v465, %v466
        %v468 = vrot.slane %v467, 2
        %v469 = vadd.f32 %v467, %v468
        %v470 = vrot.slane %v469, 1
        %v471 = vadd.f32 %v469, %v470
        %v472 = vadd.f32 %v451, %v452
        %v473 = vrot.slane %v472, 4
        %v474 = vadd.f32 %v472, %v473
        %v475 = vrot.slane %v474, 2
        %v476 = vadd.f32 %v474, %v475
        %v477 = vrot.slane %v476, 1
        %v478 = vadd.f32 %v476, %v477
        %v479 = vadd.f32 %v453, %v454
        %v480 = vrot.slane %v479, 4
        %v481 = vadd.f32 %v479, %v480
        %v482 = vrot.slane %v481, 2
        %v483 = vadd.f32 %v481, %v482
        %v484 = vrot.slane %v483, 1
        %v485 = vadd.f32 %v483, %v484
        %v486 = vadd.f32 %v455, %v456
        %v487 = vrot.slane %v486, 4
        %v488 = vadd.f32 %v486, %v487
        %v489 = vrot.slane %v488, 2
        %v490 = vadd.f32 %v488, %v489
        %v491 = vrot.slane %v490, 1
        %v492 = vadd.f32 %v490, %v491
        %v493 = vadd.f32 %v457, %v458
        %v494 = vrot.slane %v493, 4
        %v495 = vadd.f32 %v493, %v494
        %v496 = vrot.slane %v495, 2
        %v497 = vadd.f32 %v495, %v496
        %v498 = vrot.slane %v497, 1
        %v499 = vadd.f32 %v497, %v498
        %v500 = vadd.f32 %v459, %v460
        %v501 = vrot.slane %v500, 4
        %v502 = vadd.f32 %v500, %v501
        %v503 = vrot.slane %v502, 2
        %v504 = vadd.f32 %v502, %v503
        %v505 = vrot.slane %v504, 1
        %v506 = vadd.f32 %v504, %v505
        %v507 = vadd.f32 %v461, %v462
        %v508 = vrot.slane %v507, 4
        %v509 = vadd.f32 %v507, %v508
        %v510 = vrot.slane %v509, 2
        %v511 = vadd.f32 %v509, %v510
        %v512 = vrot.slane %v511, 1
        %v513 = vadd.f32 %v511, %v512
        %v514 = vadd.f32 %v463, %v464
        %v515 = vrot.slane %v514, 4
        %v516 = vadd.f32 %v514, %v515
        %v517 = vrot.slane %v516, 2
        %v518 = vadd.f32 %v516, %v517
        %v519 = vrot.slane %v518, 1
        %v520 = vadd.f32 %v518, %v519
        %v521 = vld [vmem:[%s297] sm:$0xff]
        %vm522 = vcmp.gt.s32.totalorder %v521, 0
        %v523 = vld [vmem:[%s293] sm:$0xff]
        %v524 = vsel %vm522, %v523, 4294967295
        %v525 = vlaneseq
        %v526 = vshrl.u32 %v525, 7
        %v527 = vsub.s32 0, %v526
        %v528 = vrot.slane %v524, %v527
        %530 = vbcast.lane.b32.xlu0 %v528, 256
        %v531 = vpop.permute.xlu0 %530
        %s533 = sor.u32 256, 8
        %534 = vbcast.lane.b32.xlu0 %v528, %s533
        %v535 = vpop.permute.xlu0 %534
        %v536 = vlaneseq
        %v537 = vshrl.u32 %v536, 7
        %v538 = vsub.s32 1, %v537
        %v539 = vrot.slane %v524, %v538
        %541 = vbcast.lane.b32.xlu0 %v539, 256
        %v542 = vpop.permute.xlu0 %541
        %s544 = sor.u32 256, 8
        %545 = vbcast.lane.b32.xlu0 %v539, %s544
        %v546 = vpop.permute.xlu0 %545
        %v547 = vlaneseq
        %v548 = vshrl.u32 %v547, 7
        %v549 = vsub.s32 2, %v548
        %v550 = vrot.slane %v524, %v549
        %552 = vbcast.lane.b32.xlu0 %v550, 256
        %v553 = vpop.permute.xlu0 %552
        %s555 = sor.u32 256, 8
        %556 = vbcast.lane.b32.xlu0 %v550, %s555
        %v557 = vpop.permute.xlu0 %556
        %v558 = vlaneseq
        %v559 = vshrl.u32 %v558, 7
        %v560 = vsub.s32 3, %v559
        %v561 = vrot.slane %v524, %v560
        %563 = vbcast.lane.b32.xlu0 %v561, 256
        %v564 = vpop.permute.xlu0 %563
        %s566 = sor.u32 256, 8
        %567 = vbcast.lane.b32.xlu0 %v561, %s566
        %v568 = vpop.permute.xlu0 %567
        %v569 = vlaneseq
        %v570 = vshrl.u32 %v569, 7
        %v571 = vsub.s32 4, %v570
        %v572 = vrot.slane %v524, %v571
        %574 = vbcast.lane.b32.xlu0 %v572, 256
        %v575 = vpop.permute.xlu0 %574
        %s577 = sor.u32 256, 8
        %578 = vbcast.lane.b32.xlu0 %v572, %s577
        %v579 = vpop.permute.xlu0 %578
        %v580 = vlaneseq
        %v581 = vshrl.u32 %v580, 7
        %v582 = vsub.s32 5, %v581
        %v583 = vrot.slane %v524, %v582
        %585 = vbcast.lane.b32.xlu0 %v583, 256
        %v586 = vpop.permute.xlu0 %585
        %s588 = sor.u32 256, 8
        %589 = vbcast.lane.b32.xlu0 %v583, %s588
        %v590 = vpop.permute.xlu0 %589
        %v591 = vlaneseq
        %v592 = vshrl.u32 %v591, 7
        %v593 = vsub.s32 6, %v592
        %v594 = vrot.slane %v524, %v593
        %596 = vbcast.lane.b32.xlu0 %v594, 256
        %v597 = vpop.permute.xlu0 %596
        %s599 = sor.u32 256, 8
        %600 = vbcast.lane.b32.xlu0 %v594, %s599
        %v601 = vpop.permute.xlu0 %600
        %v602 = vlaneseq
        %v603 = vshrl.u32 %v602, 7
        %v604 = vsub.s32 7, %v603
        %v605 = vrot.slane %v524, %v604
        %607 = vbcast.lane.b32.xlu0 %v605, 256
        %v608 = vpop.permute.xlu0 %607
        %s610 = sor.u32 256, 8
        %611 = vbcast.lane.b32.xlu0 %v605, %s610
        %v612 = vpop.permute.xlu0 %611
        %vm613 = vcmp.eq.s32.totalorder %v531, %v328
        %vm614 = vcmp.eq.s32.totalorder %v535, %v328
        %vm615 = vcmp.eq.s32.totalorder %v542, %v328
        %vm616 = vcmp.eq.s32.totalorder %v546, %v328
        %vm617 = vcmp.eq.s32.totalorder %v553, %v328
        %vm618 = vcmp.eq.s32.totalorder %v557, %v328
        %vm619 = vcmp.eq.s32.totalorder %v564, %v328
        %vm620 = vcmp.eq.s32.totalorder %v568, %v328
        %vm621 = vcmp.eq.s32.totalorder %v575, %v328
        %vm622 = vcmp.eq.s32.totalorder %v579, %v328
        %vm623 = vcmp.eq.s32.totalorder %v586, %v328
        %vm624 = vcmp.eq.s32.totalorder %v590, %v328
        %vm625 = vcmp.eq.s32.totalorder %v597, %v328
        %vm626 = vcmp.eq.s32.totalorder %v601, %v328
        %vm627 = vcmp.eq.s32.totalorder %v608, %v328
        %vm628 = vcmp.eq.s32.totalorder %v612, %v328
        %v629 = vsel %vm613, 1, 0
        %v630 = vsel %vm614, 1, 0
        %v631 = vsel %vm615, 1, 0
        %v632 = vsel %vm616, 1, 0
        %v633 = vsel %vm617, 1, 0
        %v634 = vsel %vm618, 1, 0
        %v635 = vsel %vm619, 1, 0
        %v636 = vsel %vm620, 1, 0
        %v637 = vsel %vm621, 1, 0
        %v638 = vsel %vm622, 1, 0
        %v639 = vsel %vm623, 1, 0
        %v640 = vsel %vm624, 1, 0
        %v641 = vsel %vm625, 1, 0
        %v642 = vsel %vm626, 1, 0
        %v643 = vsel %vm627, 1, 0
        %v644 = vsel %vm628, 1, 0
        %v645 = vcvt.s32.f32 %v629
        %v646 = vcvt.s32.f32 %v630
        %v647 = vcvt.s32.f32 %v631
        %v648 = vcvt.s32.f32 %v632
        %v649 = vcvt.s32.f32 %v633
        %v650 = vcvt.s32.f32 %v634
        %v651 = vcvt.s32.f32 %v635
        %v652 = vcvt.s32.f32 %v636
        %v653 = vcvt.s32.f32 %v637
        %v654 = vcvt.s32.f32 %v638
        %v655 = vcvt.s32.f32 %v639
        %v656 = vcvt.s32.f32 %v640
        %v657 = vcvt.s32.f32 %v641
        %v658 = vcvt.s32.f32 %v642
        %v659 = vcvt.s32.f32 %v643
        %v660 = vcvt.s32.f32 %v644
        %v661 = vadd.f32 %v645, %v646
        %v662 = vrot.slane %v661, 4
        %v663 = vadd.f32 %v661, %v662
        %v664 = vrot.slane %v663, 2
        %v665 = vadd.f32 %v663, %v664
        %v666 = vrot.slane %v665, 1
        %v667 = vadd.f32 %v665, %v666
        %v668 = vadd.f32 %v647, %v648
        %v669 = vrot.slane %v668, 4
        %v670 = vadd.f32 %v668, %v669
        %v671 = vrot.slane %v670, 2
        %v672 = vadd.f32 %v670, %v671
        %v673 = vrot.slane %v672, 1
        %v674 = vadd.f32 %v672, %v673
        %v675 = vadd.f32 %v649, %v650
        %v676 = vrot.slane %v675, 4
        %v677 = vadd.f32 %v675, %v676
        %v678 = vrot.slane %v677, 2
        %v679 = vadd.f32 %v677, %v678
        %v680 = vrot.slane %v679, 1
        %v681 = vadd.f32 %v679, %v680
        %v682 = vadd.f32 %v651, %v652
        %v683 = vrot.slane %v682, 4
        %v684 = vadd.f32 %v682, %v683
        %v685 = vrot.slane %v684, 2
        %v686 = vadd.f32 %v684, %v685
        %v687 = vrot.slane %v686, 1
        %v688 = vadd.f32 %v686, %v687
        %v689 = vadd.f32 %v653, %v654
        %v690 = vrot.slane %v689, 4
        %v691 = vadd.f32 %v689, %v690
        %v692 = vrot.slane %v691, 2
        %v693 = vadd.f32 %v691, %v692
        %v694 = vrot.slane %v693, 1
        %v695 = vadd.f32 %v693, %v694
        %v696 = vadd.f32 %v655, %v656
        %v697 = vrot.slane %v696, 4
        %v698 = vadd.f32 %v696, %v697
        %v699 = vrot.slane %v698, 2
        %v700 = vadd.f32 %v698, %v699
        %v701 = vrot.slane %v700, 1
        %v702 = vadd.f32 %v700, %v701
        %v703 = vadd.f32 %v657, %v658
        %v704 = vrot.slane %v703, 4
        %v705 = vadd.f32 %v703, %v704
        %v706 = vrot.slane %v705, 2
        %v707 = vadd.f32 %v705, %v706
        %v708 = vrot.slane %v707, 1
        %v709 = vadd.f32 %v707, %v708
        %v710 = vadd.f32 %v659, %v660
        %v711 = vrot.slane %v710, 4
        %v712 = vadd.f32 %v710, %v711
        %v713 = vrot.slane %v712, 2
        %v714 = vadd.f32 %v712, %v713
        %v715 = vrot.slane %v714, 1
        %v716 = vadd.f32 %v714, %v715
        %vm725 = vcmask 1041409
        %v726 = vsel %vm725, %v478, %v471
        %vm727 = vcmask 1042434
        %v728 = vsel %vm727, %v485, %v726
        %vm729 = vcmask 1043459
        %v730 = vsel %vm729, %v492, %v728
        %vm731 = vcmask 1044484
        %v732 = vsel %vm731, %v499, %v730
        %vm733 = vcmask 1045509
        %v734 = vsel %vm733, %v506, %v732
        %vm735 = vcmask 1046534
        %v736 = vsel %vm735, %v513, %v734
        %vm737 = vcmask 1047559
        %v738 = vsel %vm737, %v520, %v736
        %v748 = vsel %vm725, %v674, %v667
        %v749 = vsel %vm727, %v681, %v748
        %v750 = vsel %vm729, %v688, %v749
        %v751 = vsel %vm731, %v695, %v750
        %v752 = vsel %vm733, %v702, %v751
        %v753 = vsel %vm735, %v709, %v752
        %v754 = vsel %vm737, %v716, %v753
        %756 = vadd.xlane.f32.xlu0 %v738
        %v757 = vpop.xlane.xlu0 %756
        %758 = vadd.xlane.f32.xlu0 %v754
        %v759 = vpop.xlane.xlu0 %758
        %v760 = vmax.f32 %v757, 1.0
        %v761 = vmax.f32 %v759, 1.0
        %v762 = vpack.c.bf16 %v754, %v738
        %v779 = vunpack.c.l.b16 %v299
        %v780 = vunpack.c.l.b16 %v300
        %v781 = vunpack.c.l.b16 %v301
        %v782 = vunpack.c.l.b16 %v302
        %v783 = vunpack.c.l.b16 %v303
        %v784 = vunpack.c.l.b16 %v304
        %v785 = vunpack.c.l.b16 %v305
        %v786 = vunpack.c.l.b16 %v306
        %v787 = vunpack.c.l.b16 %v307
        %v788 = vunpack.c.l.b16 %v308
        %v789 = vunpack.c.l.b16 %v309
        %v790 = vunpack.c.l.b16 %v310
        %v791 = vunpack.c.l.b16 %v311
        %v792 = vunpack.c.l.b16 %v312
        %v793 = vunpack.c.l.b16 %v313
        %v794 = vunpack.c.l.b16 %v314
        %v795 = vpack.c.b16 %v780, %v779
        %v796 = vpack.c.b16 %v782, %v781
        %v797 = vpack.c.b16 %v784, %v783
        %v798 = vpack.c.b16 %v786, %v785
        %v799 = vpack.c.b16 %v788, %v787
        %v800 = vpack.c.b16 %v790, %v789
        %v801 = vpack.c.b16 %v792, %v791
        %v802 = vpack.c.b16 %v794, %v793
        %811 = vmatprep.subr.bf16.mxu0 0
        %812 = vmatpush1.bf16.msra.mxu0 %v795
        %813 = vmatprep.subr.bf16.mxu0 0
        %814 = vmatpush1.bf16.msra.mxu0 %v796
        %815 = vmatprep.subr.bf16.mxu0 0
        %816 = vmatpush1.bf16.msra.mxu0 %v797
        %817 = vmatprep.subr.bf16.mxu0 0
        %818 = vmatpush1.bf16.msra.mxu0 %v798
        %819 = vmatprep.subr.bf16.mxu0 0
        %820 = vmatpush1.bf16.msra.mxu0 %v799
        %821 = vmatprep.subr.bf16.mxu0 0
        %822 = vmatpush1.bf16.msra.mxu0 %v800
        %823 = vmatprep.subr.bf16.mxu0 0
        %824 = vmatpush1.bf16.msra.mxu0 %v801
        %825 = vmatprep.subr.bf16.mxu0 0
        %826 = vmatpush1.bf16.msra.mxu0 %v802
        %827 = vmatprep.subr.bf16.mxu0 0
        %828 = vmatpush1.bf16.msra.mxu0 0
        %829 = vmatprep.subr.bf16.mxu0 0
        %830 = vmatpush1.bf16.msra.mxu0 0
        %831 = vmatprep.subr.bf16.mxu0 0
        %832 = vmatpush1.bf16.msra.mxu0 0
        %833 = vmatprep.subr.bf16.mxu0 0
        %834 = vmatpush1.bf16.msra.mxu0 0
        %835 = vmatprep.subr.bf16.mxu0 0
        %836 = vmatpush1.bf16.msra.mxu0 0
        %837 = vmatprep.subr.bf16.mxu0 0
        %838 = vmatpush1.bf16.msra.mxu0 0
        %839 = vmatprep.subr.bf16.mxu0 0
        %840 = vmatpush1.bf16.msra.mxu0 0
        %841 = vmatprep.subr.bf16.mxu0 0
        %842 = vmatpush1.bf16.msra.mxu0 0
        %843 = vmatprep.mubr.bf16.mxu0 0
        %844 = vmatmul.mubr.bf16.gmra.mrb[0].mxu0 %v762
        %v845 = vpop.f32.mrb[0].mxu0
        %v846 = vadd.f32 0.0, %v845
        %v847 = vpop.f32.mrb[0].mxu0
        %v848 = vpop.f32.mrb[0].mxu0
        %v849 = vadd.f32 0.0, %v848
        %v850 = vpop.f32.mrb[0].mxu0
        %851 = vdwg.mxu0
        %v852 = vrcp.pop %v760
        %v853 = vmul.f32 %v846, %v852
        %v854 = vrcp.pop %v761
        %v855 = vmul.f32 %v849, %v854
        %v856 = vmul.f32 %v853, %v853
        %v857 = vmul.f32 %v855, %v855
        %vm858 = vcmask 523264
        %v859 = vsel %vm858, %v856, 0.0
        %860 = vadd.xlane.f32.xlu0 %v859
        %v861 = vpop.xlane.xlu0 %860
        %v862 = vsel %vm858, %v857, 0.0
        %863 = vadd.xlane.f32.xlu0 %v862
        %v864 = vpop.xlane.xlu0 %863
        %v865 = vrcp.pop 64.0
        %v866 = vmul.f32 %v861, %v865
        %v867 = vmul.f32 %v864, %v865
        %v868 = vadd.f32 %v866, 1e-06
        %v869 = vadd.f32 %v867, 1e-06
        %v870 = vrsqrt.pop %v868
        %v871 = vrsqrt.pop %v869
        %v872 = vmul.f32 %v853, %v870
        %v873 = vmul.f32 %v855, %v871
        %v874 = vpack.c.bf16 %v873, %v872
        %v883 = vunpack.c.l.b16 %v315
        %v884 = vunpack.c.l.b16 %v316
        %v885 = vunpack.c.l.b16 %v317
        %v886 = vunpack.c.l.b16 %v318
        %v887 = vunpack.c.l.b16 %v319
        %v888 = vunpack.c.l.b16 %v320
        %v889 = vunpack.c.l.b16 %v321
        %v890 = vunpack.c.l.b16 %v322
        %v891 = vpack.c.b16 %v884, %v883
        %v892 = vpack.c.b16 %v886, %v885
        %v893 = vpack.c.b16 %v888, %v887
        %v894 = vpack.c.b16 %v890, %v889
        %v900 = vsel %vm858, %v874, 0
        %902 = vmatprep.subr.bf16.mxu0 0
        %903 = vmatpush1.bf16.msra.mxu0 %v891
        %904 = vmatprep.subr.bf16.mxu0 0
        %905 = vmatpush1.bf16.msra.mxu0 %v892
        %906 = vmatprep.subr.bf16.mxu0 0
        %907 = vmatpush1.bf16.msra.mxu0 %v893
        %908 = vmatprep.subr.bf16.mxu0 0
        %909 = vmatpush1.bf16.msra.mxu0 %v894
        %910 = vmatprep.subr.bf16.mxu0 0
        %911 = vmatpush1.bf16.msra.mxu0 0
        %912 = vmatprep.subr.bf16.mxu0 0
        %913 = vmatpush1.bf16.msra.mxu0 0
        %914 = vmatprep.subr.bf16.mxu0 0
        %915 = vmatpush1.bf16.msra.mxu0 0
        %916 = vmatprep.subr.bf16.mxu0 0
        %917 = vmatpush1.bf16.msra.mxu0 0
        %918 = vmatprep.subr.bf16.mxu0 0
        %919 = vmatpush1.bf16.msra.mxu0 0
        %920 = vmatprep.subr.bf16.mxu0 0
        %921 = vmatpush1.bf16.msra.mxu0 0
        %922 = vmatprep.subr.bf16.mxu0 0
        %923 = vmatpush1.bf16.msra.mxu0 0
        %924 = vmatprep.subr.bf16.mxu0 0
        %925 = vmatpush1.bf16.msra.mxu0 0
        %926 = vmatprep.subr.bf16.mxu0 0
        %927 = vmatpush1.bf16.msra.mxu0 0
        %928 = vmatprep.subr.bf16.mxu0 0
        %929 = vmatpush1.bf16.msra.mxu0 0
        %930 = vmatprep.subr.bf16.mxu0 0
        %931 = vmatpush1.bf16.msra.mxu0 0
        %932 = vmatprep.subr.bf16.mxu0 0
        %933 = vmatpush1.bf16.msra.mxu0 0
        %934 = vmatprep.mubr.bf16.mxu0 0
        %935 = vmatmul.mubr.bf16.gmra.mrb[0].mxu0 %v900
        %v936 = vpop.f32.mrb[0].mxu0
        %v937 = vadd.f32 0.0, %v936
        %v938 = vpop.f32.mrb[0].mxu0
        %v939 = vpop.f32.mrb[0].mxu0
        %v940 = vadd.f32 0.0, %v939
        %v941 = vpop.f32.mrb[0].mxu0
        %942 = vdwg.mxu0
        %v943 = vmul.f32 %v937, %v940
        %v944 = vsel %vm858, %v943, 0.0
        %945 = vadd.xlane.f32.xlu0 %v944
        %v946 = vpop.xlane.xlu0 %945
        %947 = vst [vmem:[%s281] sm:$0xff] %v946
        %s948 = sand.u32 %s174, 1
        %s949 = scalar_lea.sflag [#allocation3], %s948
        %s950 = sand.u32 %s174, 1
        %s951 = smul.addr %s950, 8
        %s952 = scalar_lea.vmem [#allocation2], %s951
        // Predicated region
        $region45: #{tpu_custom_call.1} parent=43 // pred_check
          %p953 = pneg %p184
        $region46: #{tpu_custom_call.1} parent=43 // pred_check_branch
          %955 = sbr.rel (%p953) target = $region48
        $region47: #{tpu_custom_call.1} parent=43 // pred_region
          %s957 = ssub.s32 128, 128
          %958 = vsyncadd %s949, %s957
          %s959 = smul.addr %s20, 128
          %s960 = scalar_lea.hbm %s6, %s959
          %s962 = sshll.u32 %s952, 4
          %s963 = int_to_ptr.vmem [resolvable:$true] %s962
          %965 = dma.vmem_to_hbm [thread:$0]  %s963, 128, %s960, %s949
        $region48: #{tpu_custom_call.1} parent=43 // pred_fallthru
          _
      $region44: #{tpu_custom_call.1} parent=5 // pred_fallthru
        _
      %p966 = scmp.le.s32.totalorder 2, %s15
      // Predicated region
      $region49: #{tpu_custom_call.1} parent=5 // pred_check
        %p967 = pneg %p966
      $region50: #{tpu_custom_call.1} parent=5 // pred_check_branch
        %969 = sbr.rel (%p967) target = $region52
      $region51: #{tpu_custom_call.1} parent=5 // pred_region
        %s970 = ssub.s32 %s15, 2
        // Predicated region
        $region53: #{tpu_custom_call.1} parent=51 // pred_check
          %p971 = pneg %p190
        $region54: #{tpu_custom_call.1} parent=51 // pred_check_branch
          %973 = sbr.rel (%p971) target = $region56
        $region55: #{tpu_custom_call.1} parent=51 // pred_region
          %s974 = sand.u32 %s175, 1
          %s975 = scalar_lea.sflag [#allocation3], %s974
          %s976 = sand.u32 %s175, 1
          %s977 = smul.addr %s976, 8
          %s978 = scalar_lea.vmem [#allocation2], %s977
          %979 = dma.done %s975, 128
        $region56: #{tpu_custom_call.1} parent=51 // pred_fallthru
          _
      $region52: #{tpu_custom_call.1} parent=5 // pred_fallthru
        _
    $region6: #{tpu_custom_call.1} parent=1 // loop_footer
      %s19 = sadd.s32 1, %s15
    $region7: #{tpu_custom_call.1} parent=1 // loop_footer_branch
      %14 = sbr.rel target = $region3
    $region8: #{tpu_custom_call.1} parent=1 // loop_exit
      _
    %980 = vsyncpa [#allocation3], 1
    %s981 = scalar_lea.sflag [#allocation3], 1
    %982 = vsyncpa %s981, 1

</llo_original>
